<compile_context>
chip_gen: v7x
topology: tpu7x:2x2x1
jax: 0.10.0
libtpu: 0.0.40
codegen_flags: <defaults>
</compile_context>

<pallas_src>
import functools

import jax
import jax.numpy as jnp
from jax.experimental import pallas as pl
from jax.experimental.pallas import tpu as pltpu


def _round_up(x, m):
    return ((x + m - 1) // m) * m


def _vmem_limit_bytes():
    """Generation-aware scoped-VMEM limit: ~75% of physical, capped at 96 MiB."""
    try:
        cap = int(pltpu.get_tpu_info().vmem_capacity_bytes)
    except Exception:
        cap = 64 << 20  # conservative per-TC floor (v7x)
    return max(32 << 20, min(cap * 3 // 4, 96 << 20))


def _tail_compute_dtype(x_dtype):
    """bf16 tail only for bf16 I/O on chips with bf16 VPU/EUP (not v5e/v5p)."""
    if jnp.dtype(x_dtype) != jnp.dtype(jnp.bfloat16):
        return jnp.float32
    try:
        kind = jax.devices()[0].device_kind.lower()
    except Exception:
        kind = ""
    if "v5" in kind:
        return jnp.float32
    return jnp.bfloat16


def _pick_row_tile(bc, hw, itemsize, vmem_budget_bytes):
    """Row tile (multiple of 8) that (a) fits 2x in + 2x out buffers plus ~3 f32
    temporaries in the VMEM budget, (b) keeps per-step input blocks ~4 MiB so
    the ~0.35 us grid-step overhead stays small even at v7x HBM rates, and
    (c) leaves >= 8 grid steps when bc allows (DMA overlap / megacore split)."""
    hw_pad = _round_up(hw, 128)  # lane padding in VMEM
    per_row_vmem = hw_pad * (4 * itemsize + 3 * 4)
    rt_vmem = max(8, vmem_budget_bytes // per_row_vmem)
    rt_step = max(8, (4 << 20) // max(hw_pad * itemsize, 1))
    rt = min(rt_vmem, rt_step)
    rt = min(rt, max(8, _round_up(pl.cdiv(bc, 8), 8)))
    return int(max(8, (rt // 8) * 8))


def _simam_kernel(x_ref, o_ref, *, inv_n, inv_hw, e_lambda, tail_dtype):
    # x_ref / o_ref: (row_tile, H*W) — one row per (b, c) pair.
    x = x_ref[...]
    xf = x.astype(jnp.float32)

    # Two-pass variance in f32: mu, then s = sum((x - mu)^2). The second
    # cross-lane reduction runs on the XLU (slack) and avoids the
    # sumsq - hw*mu^2 cancellation problem.
    mu = jnp.sum(xf, axis=-1, keepdims=True) * inv_hw
    d = xf - mu
    d2 = d * d
    s = jnp.sum(d2, axis=-1, keepdims=True)

    # (rows, 1) column work: approx EUP reciprocal + one Newton step, and fold
    # the tanh half-scale into the column so the per-element tail stays lean.
    denom = 4.0 * (s * inv_n + e_lambda)
    inv = pl.reciprocal(denom, approx=True)
    inv = inv * (2.0 - denom * inv)
    inv_half = 0.5 * inv

    # sigmoid(y) with y = d2*inv + 0.5, via the tanh identity (1 EUP op):
    #   sigmoid(y) = 0.5 * (tanh(0.5*y) + 1) = 0.5 * (tanh(d2*inv_half + 0.25) + 1)
    d2t = d2.astype(tail_dtype)
    xt = x if x.dtype == tail_dtype else x.astype(tail_dtype)
    t = d2t * inv_half.astype(tail_dtype) + 0.25
    out = (0.5 * xt) * (jnp.tanh(t) + 1.0)
    o_ref[...] = out.astype(o_ref.dtype)


def simam(x, e_lambda=1e-4, row_tile=None):
    """SimAM forward pass. x: (B, C, H, W) — matches the PyTorch module."""
    b, c, h, w = x.shape
    hw = h * w
    bc = b * c
    # Matches PyTorch: n = hw - 1 (a 1x1 feature map divides by zero there too).
    n = float(hw - 1)

    itemsize = jnp.dtype(x.dtype).itemsize
    vmem_limit = _vmem_limit_bytes()
    if row_tile is None:
        row_tile = _pick_row_tile(bc, hw, itemsize, vmem_limit - (4 << 20))
    row_tile = max(8, _round_up(int(row_tile), 8))

    tail_dtype = _tail_compute_dtype(x.dtype)

    x2d = x.reshape(bc, hw)  # free reshape: collapse of contiguous dims
    grid = pl.cdiv(bc, row_tile)

    kernel = functools.partial(
        _simam_kernel,
        inv_n=1.0 / n,
        inv_hw=1.0 / float(hw),
        e_lambda=float(e_lambda),
        tail_dtype=tail_dtype,
    )

    out2d = pl.pallas_call(
        kernel,
        out_shape=jax.ShapeDtypeStruct((bc, hw), x.dtype),
        grid_spec=pltpu.PrefetchScalarGridSpec(
            num_scalar_prefetch=0,
            grid=(grid,),
            # Last block may be ragged when row_tile does not divide bc: OOB
            # rows read unspecified data but each row computes independently
            # and OOB writes are masked, so valid rows are unaffected.
            in_specs=[pl.BlockSpec((row_tile, hw), lambda i: (i, 0))],
            out_specs=pl.BlockSpec((row_tile, hw), lambda i: (i, 0)),
        ),
        compiler_params=pltpu.CompilerParams(
            dimension_semantics=("parallel",),
            vmem_limit_bytes=vmem_limit,
        ),
        cost_estimate=pl.CostEstimate(
            flops=9 * bc * hw,
            transcendentals=bc * hw,
            bytes_accessed=2 * bc * hw * itemsize,
        ),
    )(x2d)

    return out2d.reshape(b, c, h, w)


def simam_ref(x, e_lambda=1e-4):
    """Pure-JAX reference mirroring the PyTorch forward exactly."""
    b, c, h, w = x.shape
    n = w * h - 1
    mu = jnp.mean(x, axis=(2, 3), keepdims=True)
    d2 = (x - mu) ** 2
    y = d2 / (4.0 * (jnp.sum(d2, axis=(2, 3), keepdims=True) / n + e_lambda)) + 0.5
    return x * jax.nn.sigmoid(y)


if __name__ == "__main__":
    key = jax.random.PRNGKey(0)
    k1, k2, k3 = jax.random.split(key, 3)

    # Primary case: lane-dense spatial size (H*W = 256).
    B, C, H, W = 2, 4, 16, 16
    x = jax.random.normal(k1, (B, C, H, W), dtype=jnp.float32)
    out = jax.block_until_ready(simam(x))
    ref = simam_ref(x)
    assert out.shape == (B, C, H, W)
    assert jnp.allclose(out, ref, atol=1e-4, rtol=1e-4), "mismatch vs reference"

    # Secondary case: bc not a multiple of the row tile (ragged last block) and
    # a non-multiple-of-128 spatial size.
    B2, C2, H2, W2 = 2, 3, 7, 7
    x2 = jax.random.normal(k2, (B2, C2, H2, W2), dtype=jnp.float32)
    out2 = jax.block_until_ready(simam(x2))
    ref2 = simam_ref(x2)
    assert out2.shape == (B2, C2, H2, W2)
    assert jnp.allclose(out2, ref2, atol=1e-4, rtol=1e-4), "mismatch vs reference (odd shapes)"

    # bf16 I/O path (bf16 elementwise tail on v6e/v7x, f32 tail on v5e).
    x3 = jax.random.normal(k3, (B, C, H, W), dtype=jnp.bfloat16)
    out3 = jax.block_until_ready(simam(x3))
    ref3 = simam_ref(x3.astype(jnp.float32)).astype(jnp.bfloat16)
    assert jnp.allclose(
        out3.astype(jnp.float32), ref3.astype(jnp.float32), atol=3e-2, rtol=3e-2
    ), "mismatch vs reference (bf16)"

    print("KERNEL_OK")
</pallas_src>

<mosaic_0001>
module attributes {stable_mosaic.version = 11 : i64} {
  func.func @_simam_kernel(%arg0: i32, %arg1: memref<8x256xf32, #tpu.memory_space<vmem>>, %arg2: memref<8x256xf32, #tpu.memory_space<vmem>>) attributes {dimension_semantics = [#tpu.dimension_semantics<parallel>], iteration_bounds = array<i64: 1>, scalar_prefetch = 0 : i64, scratch_operands = 0 : i64, tpu.core_type = #tpu.core_type<tc>, window_params = [{transform_indices = @transform_0, window_bounds = array<i64: 8, 256>}, {transform_indices = @transform_1, window_bounds = array<i64: 8, 256>}]} {
    %c0 = arith.constant 0 : index
    %c0_0 = arith.constant 0 : index
    %0 = vector.load %arg1[%c0, %c0_0] : memref<8x256xf32, #tpu.memory_space<vmem>>, vector<8x256xf32>
    %cst = arith.constant dense<0.000000e+00> : vector<8xf32>
    %1 = vector.multi_reduction <add>, %0, %cst [1] : vector<8x256xf32> to vector<8xf32>
    %2 = vector.shape_cast %1 : vector<8xf32> to vector<8x1xf32>
    %cst_1 = arith.constant 3.906250e-03 : f32
    %3 = vector.broadcast %cst_1 : f32 to vector<8x1xf32>
    %4 = arith.mulf %2, %3 : vector<8x1xf32>
    %5 = vector.broadcast %4 : vector<8x1xf32> to vector<8x256xf32>
    %6 = arith.subf %0, %5 : vector<8x256xf32>
    %7 = arith.mulf %6, %6 : vector<8x256xf32>
    %cst_2 = arith.constant dense<0.000000e+00> : vector<8xf32>
    %8 = vector.multi_reduction <add>, %7, %cst_2 [1] : vector<8x256xf32> to vector<8xf32>
    %9 = vector.shape_cast %8 : vector<8xf32> to vector<8x1xf32>
    %cst_3 = arith.constant 0.00392156886 : f32
    %10 = vector.broadcast %cst_3 : f32 to vector<8x1xf32>
    %11 = arith.mulf %9, %10 : vector<8x1xf32>
    %cst_4 = arith.constant 9.99999974E-5 : f32
    %12 = vector.broadcast %cst_4 : f32 to vector<8x1xf32>
    %13 = arith.addf %11, %12 : vector<8x1xf32>
    %cst_5 = arith.constant 4.000000e+00 : f32
    %14 = vector.broadcast %cst_5 : f32 to vector<8x1xf32>
    %15 = arith.mulf %14, %13 : vector<8x1xf32>
    %16 = tpu.reciprocal %15 {approx = true} : vector<8x1xf32> -> vector<8x1xf32>
    %17 = arith.mulf %15, %16 : vector<8x1xf32>
    %cst_6 = arith.constant 2.000000e+00 : f32
    %18 = vector.broadcast %cst_6 : f32 to vector<8x1xf32>
    %19 = arith.subf %18, %17 : vector<8x1xf32>
    %20 = arith.mulf %16, %19 : vector<8x1xf32>
    %cst_7 = arith.constant 5.000000e-01 : f32
    %21 = vector.broadcast %cst_7 : f32 to vector<8x1xf32>
    %22 = arith.mulf %21, %20 : vector<8x1xf32>
    %23 = vector.broadcast %22 : vector<8x1xf32> to vector<8x256xf32>
    %24 = arith.mulf %7, %23 : vector<8x256xf32>
    %cst_8 = arith.constant 2.500000e-01 : f32
    %25 = vector.broadcast %cst_8 : f32 to vector<8x256xf32>
    %26 = arith.addf %24, %25 : vector<8x256xf32>
    %cst_9 = arith.constant 5.000000e-01 : f32
    %27 = vector.broadcast %cst_9 : f32 to vector<8x256xf32>
    %28 = arith.mulf %27, %0 : vector<8x256xf32>
    %29 = math.tanh %26 : vector<8x256xf32>
    %cst_10 = arith.constant 1.000000e+00 : f32
    %30 = vector.broadcast %cst_10 : f32 to vector<8x256xf32>
    %31 = arith.addf %29, %30 : vector<8x256xf32>
    %32 = arith.mulf %28, %31 : vector<8x256xf32>
    %c0_11 = arith.constant 0 : index
    %c0_12 = arith.constant 0 : index
    %33 = vector.load %arg2[%c0_11, %c0_12] : memref<8x256xf32, #tpu.memory_space<vmem>>, vector<8x256xf32>
    tpu.vector_store %arg2[%c0_11, %c0_12], %32 {strides = array<i32>} : memref<8x256xf32, #tpu.memory_space<vmem>>, vector<8x256xf32>,
    return
  }
  func.func @transform_0(%arg0: i32) -> (i32, i32) {
    %c0_i32 = arith.constant 0 : i32
    %c0_i32_0 = arith.constant 0 : i32
    return %arg0, %c0_i32 : i32, i32
  }
  func.func @transform_1(%arg0: i32) -> (i32, i32) {
    %c0_i32 = arith.constant 0 : i32
    %c0_i32_0 = arith.constant 0 : i32
    return %arg0, %c0_i32 : i32, i32
  }
}

</mosaic_0001>

<llo_original>
// kernel: tpu_custom_call.1
$region0: #{tpu_custom_call.1}
  #allocation0 [shape = 'u32[]', space=smem, size = 0x4, offset = 0x4, fixed_abs, tag = 'smem constant byte address 0x4 - core index']
  #allocation1 [shape = 'u32[144,128]{1,0:T(1,128)}', space=vmem, size = 0x12000, scoped, tag = 'internal scratch']
  %s0 = inlined_call_operand.hbm [shape: f32[8,256], index: 0, kind: input, shape index: {}]
  %s1 = inlined_call_operand.hbm [shape: f32[8,256], index: 1, kind: output, shape index: {}]
  %s2 = sld [smem:[#allocation0]]
  $region18: #{tpu_custom_call.1} parent=0
    _
  %s4 = ssub.s32 1, %s2
  %s5 = scalar_select 0, %s4, %s2
  $region1: #{tpu_custom_call.1} parent=0
    #allocation2 [shape = 'u8[8192]{0}', space=vmem, size = 0x2000, scoped, tag = 'input window, operand 0, single buffered']
    #allocation3 [shape = 's32[1]{0}', space=sflag, size = 0x4, scoped, tag = 'scoped memory for tpu_custom_call.1']
    #allocation4 [shape = 's32[1]{0}', space=sflag, size = 0x4, scoped, tag = 'scoped memory for tpu_custom_call.1']
    #allocation5 [shape = 'u8[8192]{0}', space=vmem, size = 0x2000, scoped, tag = 'output window, operand 0, single buffered']
    %6 = vsyncpa [#allocation3], 0
    %7 = vsyncpa [#allocation4], 0
    // Predicated region
    $region2: #{tpu_custom_call.1} parent=1 // pred_check
      _
    $region3: #{tpu_custom_call.1} parent=1 // pred_check_branch
      %9 = sbr.rel (0) target = $region5
    $region4: #{tpu_custom_call.1} parent=1 // pred_region
      %s11 = ssub.s32 256, 256
      %12 = vsyncadd [#allocation3], %s11
      %s14 = sshll.u32 [#allocation2], 4
      %s15 = int_to_ptr.vmem [resolvable:$true] %s14
      %17 = dma.hbm_to_vmem [thread:$0]  %s0, 256, %s15, [#allocation3]
    $region5: #{tpu_custom_call.1} parent=1 // pred_fallthru
      _
    // Predicated region
    $region6: #{tpu_custom_call.1} parent=1 // pred_check
      _
    $region7: #{tpu_custom_call.1} parent=1 // pred_check_branch
      %19 = sbr.rel (0) target = $region9
    $region8: #{tpu_custom_call.1} parent=1 // pred_region
      %20 = dma.done [#allocation3], 256
    $region9: #{tpu_custom_call.1} parent=1 // pred_fallthru
      _
    %v21 = vld [vmem:[#allocation2] sm:$0xff]
    %v22 = vld [vmem:[#allocation2 + $0x8] sm:$0xff]
    %v23 = vadd.f32 %v21, %v22
    %24 = vadd.xlane.f32.xlu0 %v23
    %v25 = vpop.xlane.xlu0 %24
    %v26 = vmul.f32 %v25, 0.00390625
    %v27 = vsub.f32 %v21, %v26
    %v28 = vsub.f32 %v22, %v26
    %v29 = vmul.f32 %v27, %v27
    %v30 = vmul.f32 %v28, %v28
    %v31 = vadd.f32 %v29, %v30
    %32 = vadd.xlane.f32.xlu0 %v31
    %v33 = vpop.xlane.xlu0 %32
    %v34 = vmul.f32 %v33, 0.003921569
    %v35 = vadd.f32 %v34, 0.0001
    %v36 = vmul.f32 %v35, 4.0
    %v37 = vrcp.pop %v36
    %v38 = vmul.f32 %v36, %v37
    %v39 = vsub.f32 2.0, %v38
    %v40 = vmul.f32 %v37, %v39
    %v41 = vmul.f32 %v40, 0.5
    %v42 = vmul.f32 %v29, %v41
    %v43 = vmul.f32 %v30, %v41
    %v44 = vadd.f32 %v42, 0.25
    %v45 = vadd.f32 %v43, 0.25
    %v46 = vmul.f32 %v21, 0.5
    %v47 = vmul.f32 %v22, 0.5
    %v48 = vtanh.pop %v44
    %v49 = vtanh.pop %v45
    %v50 = vadd.f32 %v48, 1.0
    %v51 = vadd.f32 %v49, 1.0
    %v52 = vmul.f32 %v46, %v50
    %v53 = vmul.f32 %v47, %v51
    %54 = vst [vmem:[#allocation5] sm:$0xff] %v52
    %55 = vst [vmem:[#allocation5 + $0x8] sm:$0xff] %v53
    // Predicated region
    $region10: #{tpu_custom_call.1} parent=1 // pred_check
      _
    $region11: #{tpu_custom_call.1} parent=1 // pred_check_branch
      %57 = sbr.rel (0) target = $region13
    $region12: #{tpu_custom_call.1} parent=1 // pred_region
      %s59 = ssub.s32 256, 256
      %60 = vsyncadd [#allocation4], %s59
      %s62 = sshll.u32 [#allocation5], 4
      %s63 = int_to_ptr.vmem [resolvable:$true] %s62
      %65 = dma.vmem_to_hbm [thread:$0]  %s63, 256, %s1, [#allocation4]
    $region13: #{tpu_custom_call.1} parent=1 // pred_fallthru
      _
    // Predicated region
    $region14: #{tpu_custom_call.1} parent=1 // pred_check
      _
    $region15: #{tpu_custom_call.1} parent=1 // pred_check_branch
      %67 = sbr.rel (0) target = $region17
    $region16: #{tpu_custom_call.1} parent=1 // pred_region
      %68 = dma.done [#allocation4], 256
    $region17: #{tpu_custom_call.1} parent=1 // pred_fallthru
      _
    %69 = vsyncpa [#allocation3], 1
    %70 = vsyncpa [#allocation4], 1

</llo_original>
